<compile_context>
chip_gen: v6e
topology: v6e:2x2x1
jax: 0.10.0
libtpu: 0.0.40
codegen_flags: <defaults>
</compile_context>

<pallas_src>
import functools

import jax
import jax.numpy as jnp
from jax.experimental import pallas as pl
from jax.experimental.pallas import tpu as pltpu

FOCAL_ALPHA = 0.25
FOCAL_GAMMA = 2.0          # fixed to 2 -> implemented as a square
SMOOTH_L1_BETA = 1.0
_NUM_CORES = 1             # 1 for v5e/v6e (single TC); set 2 for v7x partial sums


def _reg_cls_loss_kernel(num_pos_ref,
                         rp_ref, rt_ref, rw_ref,
                         cp_ref, ct_ref, cw_ref,
                         out_ref, acc_r_ref, acc_c_ref, *,
                         cls_ratio, reg_ratio, tiles_per_core,
                         grid_r, grid_c, tile_r, tile_c):
    c = pl.program_id(0)          # core / partial-sum index ("parallel")
    t = pl.program_id(1)          # tile index within this core ("arbitrary")
    g = c * tiles_per_core + t    # global tile index

    @pl.when(t == 0)
    def _init():
        acc_r_ref[...] = jnp.zeros_like(acc_r_ref)
        acc_c_ref[...] = jnp.zeros_like(acc_c_ref)

    # ---------------- SmoothL1 regression loss (this tile) ----------------
    # Whole-tile validity gate: overrun tiles (clamped index_map) skip compute entirely.
    @pl.when(g < grid_r)
    def _reg():
        diff = rp_ref[...].astype(jnp.float32) - rt_ref[...].astype(jnp.float32)
        ad = jnp.abs(diff)
        sl1 = jnp.where(ad < SMOOTH_L1_BETA,
                        (0.5 / SMOOTH_L1_BETA) * diff * diff,
                        ad - 0.5 * SMOOTH_L1_BETA)
        contrib = sl1 * rw_ref[...].astype(jnp.float32)
        # Tree-sum into a single vreg accumulator (no per-vreg VMEM ld/st of the accumulator).
        acc_r_ref[...] += jnp.sum(contrib.reshape(tile_r // 8, 8, 128), axis=0)

    # ---------------- Sigmoid focal classification loss (this tile) -------
    @pl.when(g < grid_c)
    def _cls():
        x = cp_ref[...].astype(jnp.float32)
        tt = ct_ref[...].astype(jnp.float32)
        z = jnp.exp(-jnp.abs(x))                             # shared EUP term
        bce = jnp.maximum(x, 0.0) - x * tt + jnp.log1p(z)    # stable BCE-with-logits
        p = jnp.where(x >= 0.0, 1.0, z) / (1.0 + z)          # sigmoid(x)
        one_m_pt = p + tt - 2.0 * p * tt                     # == 1 - p_t
        alpha_t = (2.0 * FOCAL_ALPHA - 1.0) * tt + (1.0 - FOCAL_ALPHA)
        focal = alpha_t * (one_m_pt * one_m_pt) * bce        # gamma == 2
        contrib = focal * cw_ref[...].astype(jnp.float32)
        acc_c_ref[...] += jnp.sum(contrib.reshape(tile_c // 8, 8, 128), axis=0)

    # ---------------- Finalize: one single-vreg reduce per loss per core ----
    @pl.when(t == tiles_per_core - 1)
    def _finalize():
        n_pos = jnp.maximum(num_pos_ref[0], 1.0)
        inv = 1.0 / n_pos
        loss_reg = reg_ratio * jnp.sum(acc_r_ref[...]) * inv
        loss_cls = cls_ratio * jnp.sum(acc_c_ref[...]) * inv
        loss = loss_reg + loss_cls
        sub = jax.lax.broadcasted_iota(jnp.int32, (1, 8, 128), 1)
        lane = jax.lax.broadcasted_iota(jnp.int32, (1, 8, 128), 2)
        slab = jnp.where((sub == 0) & (lane == 0), loss,
               jnp.where((sub == 0) & (lane == 1), loss_reg,
               jnp.where((sub == 0) & (lane == 2), loss_cls, 0.0)))
        out_ref[...] = slab


def _repack_lane_dense(x):
    """Flatten to (rows, 128) with rows a multiple of 16 (safe for f32 and bf16 layouts)."""
    flat = jnp.reshape(x, (-1,))
    total = flat.shape[0]
    pad = (-total) % (16 * 128)
    if pad:
        flat = jnp.pad(flat, (0, pad))        # zeros carry zero weight -> contribute nothing
    return jnp.reshape(flat, (-1, 128))


def _pad_rows(x2d, rows_target):
    rows = x2d.shape[0]
    if rows_target > rows:
        x2d = jnp.pad(x2d, ((0, rows_target - rows), (0, 0)))
    return x2d


def reg_cls_loss(reg_pred, reg_targets, reg_weights,
                 cls_pred, cls_targets, cls_weights, num_pos_inds,
                 *, cls_ratio=1.0, reg_ratio=1.0, tile_rows=2048, num_cores=_NUM_CORES):
    # Lane-dense views (inputs keep their dtype; cast to f32 happens inside the kernel).
    rp, rt, rw = (_repack_lane_dense(a) for a in (reg_pred, reg_targets, reg_weights))
    cp, ct, cw = (_repack_lane_dense(a) for a in (cls_pred, cls_targets, cls_weights))

    rows_r, rows_c = rp.shape[0], cp.shape[0]
    tile_rows = max(32, (int(tile_rows) // 32) * 32)

    # Grid length is set by whichever stream needs more tiles at tile_rows rows/step.
    num_tiles = max(pl.cdiv(rows_r, min(tile_rows, rows_r)),
                    pl.cdiv(rows_c, min(tile_rows, rows_c)), 1)

    # Balance the two streams so they finish in (almost) the same number of tiles.
    def _balanced_tile(rows):
        t = pl.cdiv(rows, num_tiles)
        t = ((t + 31) // 32) * 32             # layout-safe block height for f32/bf16/int8
        return min(t, rows)                   # full-extent blocks are always legal

    tile_r, tile_c = _balanced_tile(rows_r), _balanced_tile(rows_c)
    grid_r, grid_c = pl.cdiv(rows_r, tile_r), pl.cdiv(rows_c, tile_c)

    # Pad every stream to a whole number of tiles (zero weights in the pad -> zero contribution),
    # so no in-kernel ragged masks are needed at all.
    rp, rt, rw = (_pad_rows(a, grid_r * tile_r) for a in (rp, rt, rw))
    cp, ct, cw = (_pad_rows(a, grid_c * tile_c) for a in (cp, ct, cw))

    num_tiles = max(grid_r, grid_c)
    tiles_per_core = pl.cdiv(num_tiles, num_cores)

    num_pos = jnp.asarray(num_pos_inds, jnp.float32).reshape(1)

    kernel = functools.partial(
        _reg_cls_loss_kernel,
        cls_ratio=float(cls_ratio), reg_ratio=float(reg_ratio),
        tiles_per_core=tiles_per_core, grid_r=grid_r, grid_c=grid_c,
        tile_r=tile_r, tile_c=tile_c)

    # Clamp block index for a stream that ran out of tiles; its compute is pl.when-skipped.
    idx_r = lambda c, t: (jnp.minimum(c * tiles_per_core + t, grid_r - 1), 0)
    idx_c = lambda c, t: (jnp.minimum(c * tiles_per_core + t, grid_c - 1), 0)

    out = pl.pallas_call(
        kernel,
        out_shape=jax.ShapeDtypeStruct((num_cores, 8, 128), jnp.float32),
        grid_spec=pltpu.PrefetchScalarGridSpec(
            num_scalar_prefetch=0,
            grid=(num_cores, tiles_per_core),
            in_specs=[
                pl.BlockSpec(memory_space=pltpu.MemorySpace.SMEM),   # num_pos (scalar)
                pl.BlockSpec((tile_r, 128), idx_r),                  # reg_pred
                pl.BlockSpec((tile_r, 128), idx_r),                  # reg_targets
                pl.BlockSpec((tile_r, 128), idx_r),                  # reg_weights
                pl.BlockSpec((tile_c, 128), idx_c),                  # cls_pred
                pl.BlockSpec((tile_c, 128), idx_c),                  # cls_targets
                pl.BlockSpec((tile_c, 128), idx_c),                  # cls_weights
            ],
            out_specs=pl.BlockSpec((1, 8, 128), lambda c, t: (c, 0, 0)),
            scratch_shapes=[pltpu.VMEM((8, 128), jnp.float32),       # smooth-L1 accumulator (1 vreg)
                            pltpu.VMEM((8, 128), jnp.float32)],      # focal accumulator (1 vreg)
        ),
        compiler_params=pltpu.CompilerParams(
            dimension_semantics=("parallel", "arbitrary"),
            vmem_limit_bytes=32 * 1024 * 1024),
    )(num_pos, rp, rt, rw, cp, ct, cw)

    # Combine per-core partials (losses are linear in the partial sums).
    partial = jnp.sum(out, axis=0)            # (8, 128)
    return partial[0, 0], partial[0, 1], partial[0, 2]


def _reference(reg_pred, reg_targets, reg_weights,
               cls_pred, cls_targets, cls_weights, num_pos_inds,
               cls_ratio=1.0, reg_ratio=1.0):
    n_pos = jnp.maximum(jnp.asarray(num_pos_inds, jnp.float32), 1.0)
    diff = reg_pred - reg_targets
    ad = jnp.abs(diff)
    sl1 = jnp.where(ad < SMOOTH_L1_BETA, 0.5 * diff * diff / SMOOTH_L1_BETA,
                    ad - 0.5 * SMOOTH_L1_BETA)
    loss_reg = reg_ratio * jnp.sum(sl1 * reg_weights) / n_pos

    x, t = cls_pred, cls_targets
    p = jax.nn.sigmoid(x)
    bce = jnp.maximum(x, 0.0) - x * t + jnp.log1p(jnp.exp(-jnp.abs(x)))
    p_t = p * t + (1.0 - p) * (1.0 - t)
    alpha_t = FOCAL_ALPHA * t + (1.0 - FOCAL_ALPHA) * (1.0 - t)
    focal = alpha_t * (1.0 - p_t) ** 2 * bce
    loss_cls = cls_ratio * jnp.sum(focal * cls_weights) / n_pos
    return loss_reg + loss_cls, loss_reg, loss_cls


if __name__ == "__main__":
    key = jax.random.PRNGKey(0)
    B, N, RD, C = 2, 256, 4, 8
    k = jax.random.split(key, 6)

    reg_pred = jax.random.normal(k[0], (B, N, RD), jnp.float32)
    reg_targets = jax.random.normal(k[1], (B, N, RD), jnp.float32)
    pos_mask = (jax.random.uniform(k[2], (B, N, 1)) < 0.25).astype(jnp.float32)
    reg_weights = jnp.broadcast_to(pos_mask, (B, N, RD))

    cls_pred = jax.random.normal(k[3], (B, N, C), jnp.float32)
    cls_targets = (jax.random.uniform(k[4], (B, N, C)) < 0.1).astype(jnp.float32)
    cls_weights = jnp.ones((B, N, C), jnp.float32)

    num_pos_inds = jnp.sum(pos_mask)

    # 0/1 masks and all-ones weights are exact in bf16 -> halve their HBM traffic.
    loss, loss_reg, loss_cls = reg_cls_loss(
        reg_pred, reg_targets, reg_weights.astype(jnp.bfloat16),
        cls_pred, cls_targets.astype(jnp.bfloat16), cls_weights.astype(jnp.bfloat16),
        num_pos_inds, cls_ratio=1.0, reg_ratio=1.0)
    jax.block_until_ready((loss, loss_reg, loss_cls))

    ref_loss, ref_reg, ref_cls = _reference(
        reg_pred, reg_targets, reg_weights,
        cls_pred, cls_targets, cls_weights, num_pos_inds)

    assert jnp.allclose(loss, ref_loss, rtol=1e-5, atol=1e-5), (loss, ref_loss)
    assert jnp.allclose(loss_reg, ref_reg, rtol=1e-5, atol=1e-5), (loss_reg, ref_reg)
    assert jnp.allclose(loss_cls, ref_cls, rtol=1e-5, atol=1e-5), (loss_cls, ref_cls)

    print("KERNEL_OK")
</pallas_src>

<mosaic_0001>
module attributes {stable_mosaic.version = 11 : i64} {
  func.func @_reg_cls_loss_kernel(%arg0: i32, %arg1: i32, %arg2: memref<1xf32, #tpu.memory_space<smem>>, %arg3: memref<16x128xf32, #tpu.memory_space<vmem>>, %arg4: memref<16x128xf32, #tpu.memory_space<vmem>>, %arg5: memref<16x128xbf16, #tpu.memory_space<vmem>>, %arg6: memref<32x128xf32, #tpu.memory_space<vmem>>, %arg7: memref<32x128xbf16, #tpu.memory_space<vmem>>, %arg8: memref<32x128xbf16, #tpu.memory_space<vmem>>, %arg9: memref<1x8x128xf32, #tpu.memory_space<vmem>>, %arg10: memref<8x128xf32, #tpu.memory_space<vmem>>, %arg11: memref<8x128xf32, #tpu.memory_space<vmem>>) attributes {dimension_semantics = [#tpu.dimension_semantics<parallel>, #tpu.dimension_semantics<arbitrary>], iteration_bounds = array<i64: 1, 1>, scalar_prefetch = 0 : i64, scratch_operands = 2 : i64, tpu.core_type = #tpu.core_type<tc>, window_params = [{transform_indices = @transform_0, window_bounds = array<i64: 1>}, {transform_indices = @transform_1, window_bounds = array<i64: 16, 128>}, {transform_indices = @transform_2, window_bounds = array<i64: 16, 128>}, {transform_indices = @transform_3, window_bounds = array<i64: 16, 128>}, {transform_indices = @transform_4, window_bounds = array<i64: 32, 128>}, {transform_indices = @transform_5, window_bounds = array<i64: 32, 128>}, {transform_indices = @transform_6, window_bounds = array<i64: 32, 128>}, {transform_indices = @transform_7, window_bounds = array<i64: 1, 8, 128>}]} {
    %c1_i32 = arith.constant 1 : i32
    %0 = arith.muli %arg0, %c1_i32 : i32
    %1 = arith.addi %0, %arg1 : i32
    %c0_i32 = arith.constant 0 : i32
    %2 = arith.cmpi eq, %arg1, %c0_i32 : i32
    %3 = arith.extui %2 : i1 to i32
    %c0_i32_0 = arith.constant 0 : i32
    %4 = arith.cmpi ne, %3, %c0_i32_0 : i32
    scf.if %4 {
      %cst = arith.constant 0.000000e+00 : f32
      %14 = vector.broadcast %cst : f32 to vector<8x128xf32>
      %c0 = arith.constant 0 : index
      %c0_7 = arith.constant 0 : index
      %15 = vector.load %arg10[%c0, %c0_7] : memref<8x128xf32, #tpu.memory_space<vmem>>, vector<8x128xf32>
      tpu.vector_store %arg10[%c0, %c0_7], %14 {strides = array<i32>} : memref<8x128xf32, #tpu.memory_space<vmem>>, vector<8x128xf32>,
      %cst_8 = arith.constant 0.000000e+00 : f32
      %16 = vector.broadcast %cst_8 : f32 to vector<8x128xf32>
      %c0_9 = arith.constant 0 : index
      %c0_10 = arith.constant 0 : index
      %17 = vector.load %arg11[%c0_9, %c0_10] : memref<8x128xf32, #tpu.memory_space<vmem>>, vector<8x128xf32>
      tpu.vector_store %arg11[%c0_9, %c0_10], %16 {strides = array<i32>} : memref<8x128xf32, #tpu.memory_space<vmem>>, vector<8x128xf32>,
    } else {
    }
    %c1_i32_1 = arith.constant 1 : i32
    %5 = arith.cmpi slt, %1, %c1_i32_1 : i32
    %6 = arith.extui %5 : i1 to i32
    %c0_i32_2 = arith.constant 0 : i32
    %7 = arith.cmpi ne, %6, %c0_i32_2 : i32
    scf.if %7 {
      %c0 = arith.constant 0 : index
      %c0_7 = arith.constant 0 : index
      %14 = vector.load %arg3[%c0, %c0_7] : memref<16x128xf32, #tpu.memory_space<vmem>>, vector<16x128xf32>
      %c0_8 = arith.constant 0 : index
      %c0_9 = arith.constant 0 : index
      %15 = vector.load %arg4[%c0_8, %c0_9] : memref<16x128xf32, #tpu.memory_space<vmem>>, vector<16x128xf32>
      %16 = arith.subf %14, %15 : vector<16x128xf32>
      %17 = math.absf %16 : vector<16x128xf32>
      %cst = arith.constant 1.000000e+00 : f32
      %18 = vector.broadcast %cst : f32 to vector<16x128xf32>
      %19 = arith.cmpf olt, %17, %18 : vector<16x128xf32>
      %cst_10 = arith.constant 5.000000e-01 : f32
      %20 = vector.broadcast %cst_10 : f32 to vector<16x128xf32>
      %21 = arith.mulf %20, %16 : vector<16x128xf32>
      %22 = arith.mulf %21, %16 : vector<16x128xf32>
      %cst_11 = arith.constant 5.000000e-01 : f32
      %23 = vector.broadcast %cst_11 : f32 to vector<16x128xf32>
      %24 = arith.subf %17, %23 : vector<16x128xf32>
      %25 = arith.select %19, %22, %24 : vector<16x128xi1>, vector<16x128xf32>
      %c0_12 = arith.constant 0 : index
      %c0_13 = arith.constant 0 : index
      %26 = vector.load %arg5[%c0_12, %c0_13] : memref<16x128xbf16, #tpu.memory_space<vmem>>, vector<16x128xbf16>
      %27 = arith.extf %26 : vector<16x128xbf16> to vector<16x128xf32>
      %28 = arith.mulf %25, %27 : vector<16x128xf32>
      %c0_14 = arith.constant 0 : index
      %c0_15 = arith.constant 0 : index
      %29 = vector.load %arg10[%c0_14, %c0_15] : memref<8x128xf32, #tpu.memory_space<vmem>>, vector<8x128xf32>
      %30 = vector.shape_cast %28 : vector<16x128xf32> to vector<2x8x128xf32>
      %cst_16 = arith.constant dense<0.000000e+00> : vector<8x128xf32>
      %31 = vector.multi_reduction <add>, %30, %cst_16 [0] : vector<2x8x128xf32> to vector<8x128xf32>
      %32 = arith.addf %29, %31 : vector<8x128xf32>
      %c0_17 = arith.constant 0 : index
      %c0_18 = arith.constant 0 : index
      %33 = vector.load %arg10[%c0_17, %c0_18] : memref<8x128xf32, #tpu.memory_space<vmem>>, vector<8x128xf32>
      tpu.vector_store %arg10[%c0_17, %c0_18], %32 {strides = array<i32>} : memref<8x128xf32, #tpu.memory_space<vmem>>, vector<8x128xf32>,
    } else {
    }
    %c1_i32_3 = arith.constant 1 : i32
    %8 = arith.cmpi slt, %1, %c1_i32_3 : i32
    %9 = arith.extui %8 : i1 to i32
    %c0_i32_4 = arith.constant 0 : i32
    %10 = arith.cmpi ne, %9, %c0_i32_4 : i32
    scf.if %10 {
      %c0 = arith.constant 0 : index
      %c0_7 = arith.constant 0 : index
      %14 = vector.load %arg6[%c0, %c0_7] : memref<32x128xf32, #tpu.memory_space<vmem>>, vector<32x128xf32>
      %c0_8 = arith.constant 0 : index
      %c0_9 = arith.constant 0 : index
      %15 = vector.load %arg7[%c0_8, %c0_9] : memref<32x128xbf16, #tpu.memory_space<vmem>>, vector<32x128xbf16>
      %16 = arith.extf %15 : vector<32x128xbf16> to vector<32x128xf32>
      %17 = math.absf %14 : vector<32x128xf32>
      %cst = arith.constant 0.000000e+00 : f32
      %18 = vector.broadcast %cst : f32 to vector<32x128xf32>
      %19 = arith.subf %18, %17 : vector<32x128xf32>
      %20 = math.exp %19 : vector<32x128xf32>
      %cst_10 = arith.constant 0.000000e+00 : f32
      %21 = vector.broadcast %cst_10 : f32 to vector<32x128xf32>
      %22 = arith.maximumf %14, %21 : vector<32x128xf32>
      %23 = arith.mulf %14, %16 : vector<32x128xf32>
      %24 = arith.subf %22, %23 : vector<32x128xf32>
      %25 = math.log1p %20 : vector<32x128xf32>
      %26 = arith.addf %24, %25 : vector<32x128xf32>
      %cst_11 = arith.constant 0.000000e+00 : f32
      %27 = vector.broadcast %cst_11 : f32 to vector<32x128xf32>
      %28 = arith.cmpf oge, %14, %27 : vector<32x128xf32>
      %cst_12 = arith.constant 1.000000e+00 : f32
      %29 = vector.broadcast %cst_12 : f32 to vector<32x128xf32>
      %30 = arith.select %28, %29, %20 : vector<32x128xi1>, vector<32x128xf32>
      %cst_13 = arith.constant 1.000000e+00 : f32
      %31 = vector.broadcast %cst_13 : f32 to vector<32x128xf32>
      %32 = arith.addf %31, %20 : vector<32x128xf32>
      %33 = arith.divf %30, %32 : vector<32x128xf32>
      %34 = arith.addf %33, %16 : vector<32x128xf32>
      %cst_14 = arith.constant 2.000000e+00 : f32
      %35 = vector.broadcast %cst_14 : f32 to vector<32x128xf32>
      %36 = arith.mulf %35, %33 : vector<32x128xf32>
      %37 = arith.mulf %36, %16 : vector<32x128xf32>
      %38 = arith.subf %34, %37 : vector<32x128xf32>
      %cst_15 = arith.constant -5.000000e-01 : f32
      %39 = vector.broadcast %cst_15 : f32 to vector<32x128xf32>
      %40 = arith.mulf %39, %16 : vector<32x128xf32>
      %cst_16 = arith.constant 7.500000e-01 : f32
      %41 = vector.broadcast %cst_16 : f32 to vector<32x128xf32>
      %42 = arith.addf %40, %41 : vector<32x128xf32>
      %43 = arith.mulf %38, %38 : vector<32x128xf32>
      %44 = arith.mulf %42, %43 : vector<32x128xf32>
      %45 = arith.mulf %44, %26 : vector<32x128xf32>
      %c0_17 = arith.constant 0 : index
      %c0_18 = arith.constant 0 : index
      %46 = vector.load %arg8[%c0_17, %c0_18] : memref<32x128xbf16, #tpu.memory_space<vmem>>, vector<32x128xbf16>
      %47 = arith.extf %46 : vector<32x128xbf16> to vector<32x128xf32>
      %48 = arith.mulf %45, %47 : vector<32x128xf32>
      %c0_19 = arith.constant 0 : index
      %c0_20 = arith.constant 0 : index
      %49 = vector.load %arg11[%c0_19, %c0_20] : memref<8x128xf32, #tpu.memory_space<vmem>>, vector<8x128xf32>
      %50 = vector.shape_cast %48 : vector<32x128xf32> to vector<4x8x128xf32>
      %cst_21 = arith.constant dense<0.000000e+00> : vector<8x128xf32>
      %51 = vector.multi_reduction <add>, %50, %cst_21 [0] : vector<4x8x128xf32> to vector<8x128xf32>
      %52 = arith.addf %49, %51 : vector<8x128xf32>
      %c0_22 = arith.constant 0 : index
      %c0_23 = arith.constant 0 : index
      %53 = vector.load %arg11[%c0_22, %c0_23] : memref<8x128xf32, #tpu.memory_space<vmem>>, vector<8x128xf32>
      tpu.vector_store %arg11[%c0_22, %c0_23], %52 {strides = array<i32>} : memref<8x128xf32, #tpu.memory_space<vmem>>, vector<8x128xf32>,
    } else {
    }
    %c0_i32_5 = arith.constant 0 : i32
    %11 = arith.cmpi eq, %arg1, %c0_i32_5 : i32
    %12 = arith.extui %11 : i1 to i32
    %c0_i32_6 = arith.constant 0 : i32
    %13 = arith.cmpi ne, %12, %c0_i32_6 : i32
    scf.if %13 {
      %c0 = arith.constant 0 : index
      %14 = memref.load %arg2[%c0] : memref<1xf32, #tpu.memory_space<smem>>
      %cst = arith.constant 1.000000e+00 : f32
      %15 = arith.maximumf %14, %cst : f32
      %cst_7 = arith.constant 1.000000e+00 : f32
      %16 = arith.divf %cst_7, %15 : f32
      %c0_8 = arith.constant 0 : index
      %c0_9 = arith.constant 0 : index
      %17 = vector.load %arg10[%c0_8, %c0_9] : memref<8x128xf32, #tpu.memory_space<vmem>>, vector<8x128xf32>
      %18 = vector.shape_cast %17 : vector<8x128xf32> to vector<1x8x128xf32>
      %cst_10 = arith.constant dense<0.000000e+00> : vector<1xf32>
      %19 = vector.multi_reduction <add>, %18, %cst_10 [1, 2] : vector<1x8x128xf32> to vector<1xf32>
      %20 = vector.shape_cast %19 : vector<1xf32> to vector<1x1x1xf32>
      %21 = vector.extract %20[0, 0, 0] : f32 from vector<1x1x1xf32>
      %cst_11 = arith.constant 1.000000e+00 : f32
      %22 = arith.mulf %cst_11, %21 : f32
      %23 = arith.mulf %22, %16 : f32
      %c0_12 = arith.constant 0 : index
      %c0_13 = arith.constant 0 : index
      %24 = vector.load %arg11[%c0_12, %c0_13] : memref<8x128xf32, #tpu.memory_space<vmem>>, vector<8x128xf32>
      %25 = vector.shape_cast %24 : vector<8x128xf32> to vector<1x8x128xf32>
      %cst_14 = arith.constant dense<0.000000e+00> : vector<1xf32>
      %26 = vector.multi_reduction <add>, %25, %cst_14 [1, 2] : vector<1x8x128xf32> to vector<1xf32>
      %27 = vector.shape_cast %26 : vector<1xf32> to vector<1x1x1xf32>
      %28 = vector.extract %27[0, 0, 0] : f32 from vector<1x1x1xf32>
      %cst_15 = arith.constant 1.000000e+00 : f32
      %29 = arith.mulf %cst_15, %28 : f32
      %30 = arith.mulf %29, %16 : f32
      %31 = arith.addf %23, %30 : f32
      %32 = tpu.iota {dimensions = array<i32: 1>} : vector<1x8x128xi32>
      %33 = tpu.iota {dimensions = array<i32: 2>} : vector<1x8x128xi32>
      %c0_i32_16 = arith.constant 0 : i32
      %34 = vector.broadcast %c0_i32_16 : i32 to vector<1x8x128xi32>
      %35 = arith.cmpi eq, %32, %34 : vector<1x8x128xi32>
      %c0_i32_17 = arith.constant 0 : i32
      %36 = vector.broadcast %c0_i32_17 : i32 to vector<1x8x128xi32>
      %37 = arith.cmpi eq, %33, %36 : vector<1x8x128xi32>
      %38 = arith.andi %35, %37 : vector<1x8x128xi1>
      %c0_i32_18 = arith.constant 0 : i32
      %39 = vector.broadcast %c0_i32_18 : i32 to vector<1x8x128xi32>
      %40 = arith.cmpi eq, %32, %39 : vector<1x8x128xi32>
      %c1_i32_19 = arith.constant 1 : i32
      %41 = vector.broadcast %c1_i32_19 : i32 to vector<1x8x128xi32>
      %42 = arith.cmpi eq, %33, %41 : vector<1x8x128xi32>
      %43 = arith.andi %40, %42 : vector<1x8x128xi1>
      %c0_i32_20 = arith.constant 0 : i32
      %44 = vector.broadcast %c0_i32_20 : i32 to vector<1x8x128xi32>
      %45 = arith.cmpi eq, %32, %44 : vector<1x8x128xi32>
      %c2_i32 = arith.constant 2 : i32
      %46 = vector.broadcast %c2_i32 : i32 to vector<1x8x128xi32>
      %47 = arith.cmpi eq, %33, %46 : vector<1x8x128xi32>
      %48 = arith.andi %45, %47 : vector<1x8x128xi1>
      %cst_21 = arith.constant 0.000000e+00 : f32
      %49 = vector.broadcast %30 : f32 to vector<1x8x128xf32>
      %50 = vector.broadcast %cst_21 : f32 to vector<1x8x128xf32>
      %51 = arith.select %48, %49, %50 : vector<1x8x128xi1>, vector<1x8x128xf32>
      %52 = vector.broadcast %23 : f32 to vector<1x8x128xf32>
      %53 = arith.select %43, %52, %51 : vector<1x8x128xi1>, vector<1x8x128xf32>
      %54 = vector.broadcast %31 : f32 to vector<1x8x128xf32>
      %55 = arith.select %38, %54, %53 : vector<1x8x128xi1>, vector<1x8x128xf32>
      %c0_22 = arith.constant 0 : index
      %c0_23 = arith.constant 0 : index
      %c0_24 = arith.constant 0 : index
      %56 = vector.load %arg9[%c0_22, %c0_23, %c0_24] : memref<1x8x128xf32, #tpu.memory_space<vmem>>, vector<1x8x128xf32>
      tpu.vector_store %arg9[%c0_22, %c0_23, %c0_24], %55 {strides = array<i32>} : memref<1x8x128xf32, #tpu.memory_space<vmem>>, vector<1x8x128xf32>,
    } else {
    }
    return
  }
  func.func @transform_0(%arg0: i32, %arg1: i32) -> i32 {
    %c0_i32 = arith.constant 0 : i32
    %c0_i32_0 = arith.constant 0 : i32
    return %c0_i32 : i32
  }
  func.func @transform_1(%arg0: i32, %arg1: i32) -> (i32, i32) {
    %c1_i32 = arith.constant 1 : i32
    %0 = arith.muli %arg0, %c1_i32 : i32
    %1 = arith.addi %0, %arg1 : i32
    %c0_i32 = arith.constant 0 : i32
    %2 = arith.minsi %1, %c0_i32 : i32
    %c0_i32_0 = arith.constant 0 : i32
    %c0_i32_1 = arith.constant 0 : i32
    return %2, %c0_i32_0 : i32, i32
  }
  func.func @transform_2(%arg0: i32, %arg1: i32) -> (i32, i32) {
    %c1_i32 = arith.constant 1 : i32
    %0 = arith.muli %arg0, %c1_i32 : i32
    %1 = arith.addi %0, %arg1 : i32
    %c0_i32 = arith.constant 0 : i32
    %2 = arith.minsi %1, %c0_i32 : i32
    %c0_i32_0 = arith.constant 0 : i32
    %c0_i32_1 = arith.constant 0 : i32
    return %2, %c0_i32_0 : i32, i32
  }
  func.func @transform_3(%arg0: i32, %arg1: i32) -> (i32, i32) {
    %c1_i32 = arith.constant 1 : i32
    %0 = arith.muli %arg0, %c1_i32 : i32
    %1 = arith.addi %0, %arg1 : i32
    %c0_i32 = arith.constant 0 : i32
    %2 = arith.minsi %1, %c0_i32 : i32
    %c0_i32_0 = arith.constant 0 : i32
    %c0_i32_1 = arith.constant 0 : i32
    return %2, %c0_i32_0 : i32, i32
  }
  func.func @transform_4(%arg0: i32, %arg1: i32) -> (i32, i32) {
    %c1_i32 = arith.constant 1 : i32
    %0 = arith.muli %arg0, %c1_i32 : i32
    %1 = arith.addi %0, %arg1 : i32
    %c0_i32 = arith.constant 0 : i32
    %2 = arith.minsi %1, %c0_i32 : i32
    %c0_i32_0 = arith.constant 0 : i32
    %c0_i32_1 = arith.constant 0 : i32
    return %2, %c0_i32_0 : i32, i32
  }
  func.func @transform_5(%arg0: i32, %arg1: i32) -> (i32, i32) {
    %c1_i32 = arith.constant 1 : i32
    %0 = arith.muli %arg0, %c1_i32 : i32
    %1 = arith.addi %0, %arg1 : i32
    %c0_i32 = arith.constant 0 : i32
    %2 = arith.minsi %1, %c0_i32 : i32
    %c0_i32_0 = arith.constant 0 : i32
    %c0_i32_1 = arith.constant 0 : i32
    return %2, %c0_i32_0 : i32, i32
  }
  func.func @transform_6(%arg0: i32, %arg1: i32) -> (i32, i32) {
    %c1_i32 = arith.constant 1 : i32
    %0 = arith.muli %arg0, %c1_i32 : i32
    %1 = arith.addi %0, %arg1 : i32
    %c0_i32 = arith.constant 0 : i32
    %2 = arith.minsi %1, %c0_i32 : i32
    %c0_i32_0 = arith.constant 0 : i32
    %c0_i32_1 = arith.constant 0 : i32
    return %2, %c0_i32_0 : i32, i32
  }
  func.func @transform_7(%arg0: i32, %arg1: i32) -> (i32, i32, i32) {
    %c0_i32 = arith.constant 0 : i32
    %c0_i32_0 = arith.constant 0 : i32
    %c0_i32_1 = arith.constant 0 : i32
    return %arg0, %c0_i32, %c0_i32_0 : i32, i32, i32
  }
}

</mosaic_0001>

<llo_original>
// kernel: tpu_custom_call.1
$region0: #{tpu_custom_call.1}
  #allocation0 [shape = 'u32[]', space=smem, size = 0x4, offset = 0x4, fixed_abs, tag = 'smem constant byte address 0x4 - core index']
  #allocation1 [shape = 'u32[144,128]{1,0:T(1,128)}', space=vmem, size = 0x12000, scoped, tag = 'internal scratch']
  #allocation2 [shape = 'f32[8,128]{1,0:T(8,128)}', space=vmem, size = 0x1000, scoped, tag = 'scratch operand']
  #allocation3 [shape = 'f32[8,128]{1,0:T(8,128)}', space=vmem, size = 0x1000, scoped, tag = 'scratch operand']
  #allocation4 [shape = 'f32[1]{0:T(128)S(6)}', space=smem, size = 0x200, scoped, tag = 'scoped memory for tpu_custom_call.1']
  %s0 = inlined_call_operand.<no memory space> [shape: f32[1], index: 0, kind: input, shape index: {}]
  %s1 = inlined_call_operand.hbm [shape: f32[16,128], index: 1, kind: input, shape index: {}]
  %s2 = inlined_call_operand.hbm [shape: f32[16,128], index: 2, kind: input, shape index: {}]
  %s3 = inlined_call_operand.hbm [shape: bf16[16,128], index: 3, kind: input, shape index: {}]
  %s4 = inlined_call_operand.hbm [shape: f32[32,128], index: 4, kind: input, shape index: {}]
  %s5 = inlined_call_operand.hbm [shape: bf16[32,128], index: 5, kind: input, shape index: {}]
  %s6 = inlined_call_operand.hbm [shape: bf16[32,128], index: 6, kind: input, shape index: {}]
  %s7 = inlined_call_operand.hbm [shape: f32[1,8,128], index: 7, kind: output, shape index: {}]
  %s8 = sld [smem:[#allocation0]]
  $region74: #{tpu_custom_call.1} parent=0
    _
  %s10 = ssub.s32 1, %s8
  %s11 = scalar_select 0, %s10, %s8
  %12 = sst [smem:[#allocation4]] %s0
  $region1: #{tpu_custom_call.1} parent=0
    #allocation5 [shape = 'u8[8192]{0}', space=vmem, size = 0x2000, scoped, tag = 'input window, operand 1, single buffered']
    #allocation6 [shape = 's32[1]{0}', space=sflag, size = 0x4, scoped, tag = 'scoped memory for tpu_custom_call.1']
    #allocation7 [shape = 's32[1]{0}', space=sflag, size = 0x4, scoped, tag = 'scoped memory for tpu_custom_call.1']
    #allocation8 [shape = 'u8[8192]{0}', space=vmem, size = 0x2000, scoped, tag = 'input window, operand 2, single buffered']
    #allocation9 [shape = 's32[1]{0}', space=sflag, size = 0x4, scoped, tag = 'scoped memory for tpu_custom_call.1']
    #allocation10 [shape = 'u8[4096]{0}', space=vmem, size = 0x1000, scoped, tag = 'input window, operand 3, single buffered']
    #allocation11 [shape = 'u8[16384]{0}', space=vmem, size = 0x4000, scoped, tag = 'input window, operand 4, single buffered']
    #allocation12 [shape = 's32[1]{0}', space=sflag, size = 0x4, scoped, tag = 'scoped memory for tpu_custom_call.1']
    #allocation13 [shape = 'u8[8192]{0}', space=vmem, size = 0x2000, scoped, tag = 'input window, operand 5, single buffered']
    #allocation14 [shape = 'u8[8192]{0}', space=vmem, size = 0x2000, scoped, tag = 'input window, operand 6, single buffered']
    #allocation15 [shape = 's32[1]{0}', space=sflag, size = 0x4, scoped, tag = 'scoped memory for tpu_custom_call.1']
    #allocation16 [shape = 'u8[4096]{0}', space=vmem, size = 0x1000, scoped, tag = 'output window, operand 0, single buffered']
    %13 = vsyncpa [#allocation6], 0
    %14 = vsyncpa [#allocation9], 0
    %15 = vsyncpa [#allocation12], 0
    %16 = vsyncpa [#allocation15], 0
    %17 = vsyncpa [#allocation7], 0
    // Predicated region
    $region2: #{tpu_custom_call.1} parent=1 // pred_check
      _
    $region3: #{tpu_custom_call.1} parent=1 // pred_check_branch
      %19 = sbr.rel (0) target = $region5
    $region4: #{tpu_custom_call.1} parent=1 // pred_region
      _
    $region5: #{tpu_custom_call.1} parent=1 // pred_fallthru
      _
    // Predicated region
    $region6: #{tpu_custom_call.1} parent=1 // pred_check
      _
    $region7: #{tpu_custom_call.1} parent=1 // pred_check_branch
      %21 = sbr.rel (0) target = $region9
    $region8: #{tpu_custom_call.1} parent=1 // pred_region
      %s22 = sadd.s32 0, 0
      %p23 = scmp.lt.s32.totalorder %s22, 0
      %s24 = scalar_select %p23, %s22, 0
      %s25 = smul.u32 2, %s24
      %s27 = ssub.s32 256, 256
      %28 = vsyncadd [#allocation6], %s27
      %s29 = smul.addr %s25, 128
      %s30 = scalar_lea.hbm %s1, %s29
      %s31 = sshll.u32 [#allocation5], 4
      %s32 = int_to_ptr.vmem [resolvable:$true] %s31
      %37 = dma.hbm_to_vmem [thread:$0]  %s30, 256, %s32, [#allocation6], 128, 128, 8
    $region9: #{tpu_custom_call.1} parent=1 // pred_fallthru
      _
    // Predicated region
    $region10: #{tpu_custom_call.1} parent=1 // pred_check
      _
    $region11: #{tpu_custom_call.1} parent=1 // pred_check_branch
      %39 = sbr.rel (0) target = $region13
    $region12: #{tpu_custom_call.1} parent=1 // pred_region
      %s40 = sadd.s32 0, 0
      %p41 = scmp.lt.s32.totalorder %s40, 0
      %s42 = scalar_select %p41, %s40, 0
      %s43 = smul.u32 2, %s42
      %s45 = ssub.s32 256, 256
      %46 = vsyncadd [#allocation9], %s45
      %s47 = smul.addr %s43, 128
      %s48 = scalar_lea.hbm %s2, %s47
      %s49 = sshll.u32 [#allocation8], 4
      %s50 = int_to_ptr.vmem [resolvable:$true] %s49
      %55 = dma.hbm_to_vmem [thread:$0]  %s48, 256, %s50, [#allocation9], 128, 128, 8
    $region13: #{tpu_custom_call.1} parent=1 // pred_fallthru
      _
    // Predicated region
    $region14: #{tpu_custom_call.1} parent=1 // pred_check
      _
    $region15: #{tpu_custom_call.1} parent=1 // pred_check_branch
      %57 = sbr.rel (0) target = $region17
    $region16: #{tpu_custom_call.1} parent=1 // pred_region
      %s58 = sadd.s32 0, 0
      %p59 = scmp.lt.s32.totalorder %s58, 0
      %s60 = scalar_select %p59, %s58, 0
      %s61 = smul.u32 2, %s60
      %s63 = ssub.s32 128, 128
      %64 = vsyncadd [#allocation9], %s63
      %s65 = smul.addr %s61, 64
      %s66 = scalar_lea.hbm %s3, %s65
      %s67 = sshll.u32 [#allocation10], 4
      %s68 = int_to_ptr.vmem [resolvable:$true] %s67
      %73 = dma.hbm_to_vmem [thread:$0]  %s66, 128, %s68, [#allocation9], 64, 64, 4
    $region17: #{tpu_custom_call.1} parent=1 // pred_fallthru
      _
    // Predicated region
    $region18: #{tpu_custom_call.1} parent=1 // pred_check
      _
    $region19: #{tpu_custom_call.1} parent=1 // pred_check_branch
      %75 = sbr.rel (0) target = $region21
    $region20: #{tpu_custom_call.1} parent=1 // pred_region
      %s76 = sadd.s32 0, 0
      %p77 = scmp.lt.s32.totalorder %s76, 0
      %s78 = scalar_select %p77, %s76, 0
      %s79 = smul.u32 4, %s78
      %s81 = ssub.s32 512, 512
      %82 = vsyncadd [#allocation12], %s81
      %s83 = smul.addr %s79, 128
      %s84 = scalar_lea.hbm %s4, %s83
      %s85 = sshll.u32 [#allocation11], 4
      %s86 = int_to_ptr.vmem [resolvable:$true] %s85
      %91 = dma.hbm_to_vmem [thread:$0]  %s84, 512, %s86, [#allocation12], 128, 128, 8
    $region21: #{tpu_custom_call.1} parent=1 // pred_fallthru
      _
    // Predicated region
    $region22: #{tpu_custom_call.1} parent=1 // pred_check
      _
    $region23: #{tpu_custom_call.1} parent=1 // pred_check_branch
      %93 = sbr.rel (0) target = $region25
    $region24: #{tpu_custom_call.1} parent=1 // pred_region
      %s94 = sadd.s32 0, 0
      %p95 = scmp.lt.s32.totalorder %s94, 0
      %s96 = scalar_select %p95, %s94, 0
      %s97 = smul.u32 4, %s96
      %s99 = ssub.s32 256, 256
      %100 = vsyncadd [#allocation12], %s99
      %s101 = smul.addr %s97, 64
      %s102 = scalar_lea.hbm %s5, %s101
      %s103 = sshll.u32 [#allocation13], 4
      %s104 = int_to_ptr.vmem [resolvable:$true] %s103
      %109 = dma.hbm_to_vmem [thread:$0]  %s102, 256, %s104, [#allocation12], 64, 64, 4
    $region25: #{tpu_custom_call.1} parent=1 // pred_fallthru
      _
    // Predicated region
    $region26: #{tpu_custom_call.1} parent=1 // pred_check
      _
    $region27: #{tpu_custom_call.1} parent=1 // pred_check_branch
      %111 = sbr.rel (0) target = $region29
    $region28: #{tpu_custom_call.1} parent=1 // pred_region
      %s112 = sadd.s32 0, 0
      %p113 = scmp.lt.s32.totalorder %s112, 0
      %s114 = scalar_select %p113, %s112, 0
      %s115 = smul.u32 4, %s114
      %s117 = ssub.s32 256, 256
      %118 = vsyncadd [#allocation15], %s117
      %s119 = smul.addr %s115, 64
      %s120 = scalar_lea.hbm %s6, %s119
      %s121 = sshll.u32 [#allocation14], 4
      %s122 = int_to_ptr.vmem [resolvable:$true] %s121
      %127 = dma.hbm_to_vmem [thread:$0]  %s120, 256, %s122, [#allocation15], 64, 64, 4
    $region29: #{tpu_custom_call.1} parent=1 // pred_fallthru
      _
    // Predicated region
    $region30: #{tpu_custom_call.1} parent=1 // pred_check
      _
    $region31: #{tpu_custom_call.1} parent=1 // pred_check_branch
      %129 = sbr.rel (0) target = $region33
    $region32: #{tpu_custom_call.1} parent=1 // pred_region
      %130 = dma.done [#allocation6], 256
    $region33: #{tpu_custom_call.1} parent=1 // pred_fallthru
      _
    // Predicated region
    $region34: #{tpu_custom_call.1} parent=1 // pred_check
      _
    $region35: #{tpu_custom_call.1} parent=1 // pred_check_branch
      %132 = sbr.rel (0) target = $region37
    $region36: #{tpu_custom_call.1} parent=1 // pred_region
      %133 = dma.done [#allocation9], 256
    $region37: #{tpu_custom_call.1} parent=1 // pred_fallthru
      _
    // Predicated region
    $region38: #{tpu_custom_call.1} parent=1 // pred_check
      _
    $region39: #{tpu_custom_call.1} parent=1 // pred_check_branch
      %135 = sbr.rel (0) target = $region41
    $region40: #{tpu_custom_call.1} parent=1 // pred_region
      %136 = dma.done [#allocation9], 128
    $region41: #{tpu_custom_call.1} parent=1 // pred_fallthru
      _
    // Predicated region
    $region42: #{tpu_custom_call.1} parent=1 // pred_check
      _
    $region43: #{tpu_custom_call.1} parent=1 // pred_check_branch
      %138 = sbr.rel (0) target = $region45
    $region44: #{tpu_custom_call.1} parent=1 // pred_region
      %139 = dma.done [#allocation12], 512
    $region45: #{tpu_custom_call.1} parent=1 // pred_fallthru
      _
    // Predicated region
    $region46: #{tpu_custom_call.1} parent=1 // pred_check
      _
    $region47: #{tpu_custom_call.1} parent=1 // pred_check_branch
      %141 = sbr.rel (0) target = $region49
    $region48: #{tpu_custom_call.1} parent=1 // pred_region
      %142 = dma.done [#allocation12], 256
    $region49: #{tpu_custom_call.1} parent=1 // pred_fallthru
      _
    // Predicated region
    $region50: #{tpu_custom_call.1} parent=1 // pred_check
      _
    $region51: #{tpu_custom_call.1} parent=1 // pred_check_branch
      %144 = sbr.rel (0) target = $region53
    $region52: #{tpu_custom_call.1} parent=1 // pred_region
      %145 = dma.done [#allocation15], 256
    $region53: #{tpu_custom_call.1} parent=1 // pred_fallthru
      _
    %s146 = sadd.s32 0, 0
    %p147 = scmp.lt.s32.totalorder %s146, 0
    %s148 = scalar_select %p147, %s146, 0
    %s149 = smul.u32 2, %s148
    %s150 = sadd.s32 0, 0
    %p151 = scmp.lt.s32.totalorder %s150, 0
    %s152 = scalar_select %p151, %s150, 0
    %s153 = smul.u32 2, %s152
    %s154 = sadd.s32 0, 0
    %p155 = scmp.lt.s32.totalorder %s154, 0
    %s156 = scalar_select %p155, %s154, 0
    %s157 = smul.u32 2, %s156
    %s158 = sadd.s32 0, 0
    %p159 = scmp.lt.s32.totalorder %s158, 0
    %s160 = scalar_select %p159, %s158, 0
    %s161 = smul.u32 4, %s160
    %s162 = sadd.s32 0, 0
    %p163 = scmp.lt.s32.totalorder %s162, 0
    %s164 = scalar_select %p163, %s162, 0
    %s165 = smul.u32 4, %s164
    %s166 = sadd.s32 0, 0
    %p167 = scmp.lt.s32.totalorder %s166, 0
    %s168 = scalar_select %p167, %s166, 0
    %s169 = smul.u32 4, %s168
    %s170 = sadd.s32 0, 0
    %p171 = scmp.eq.s32.totalorder 0, 0
    // Predicated region
    $region54: #{tpu_custom_call.1} parent=1 // pred_check
      %p172 = pneg %p171
    $region55: #{tpu_custom_call.1} parent=1 // pred_check_branch
      %174 = sbr.rel (%p172) target = $region57
    $region56: #{tpu_custom_call.1} parent=1 // pred_region
      %175 = vst [vmem:[#allocation2] sm:$0xff] 0.0
      %176 = vst [vmem:[#allocation3] sm:$0xff] 0.0
    $region57: #{tpu_custom_call.1} parent=1 // pred_fallthru
      _
    %p177 = scmp.lt.s32.totalorder %s170, 1
    // Predicated region
    $region58: #{tpu_custom_call.1} parent=1 // pred_check
      %p178 = pneg %p177
    $region59: #{tpu_custom_call.1} parent=1 // pred_check_branch
      %180 = sbr.rel (%p178) target = $region61
    $region60: #{tpu_custom_call.1} parent=1 // pred_region
      %v181 = vld [vmem:[#allocation5] sm:$0xff]
      %v182 = vld [vmem:[#allocation5 + $0x8] sm:$0xff]
      %v183 = vld [vmem:[#allocation8] sm:$0xff]
      %v184 = vld [vmem:[#allocation8 + $0x8] sm:$0xff]
      %v185 = vsub.f32 %v181, %v183
      %v186 = vsub.f32 %v182, %v184
      %v187 = vand.u32 2147483647, %v185
      %v188 = vand.u32 2147483647, %v186
      %vm189 = vcmp.lt.f32.partialorder %v187, 1.0
      %vm190 = vcmp.lt.f32.partialorder %v188, 1.0
      %v191 = vmul.f32 %v185, 0.5
      %v192 = vmul.f32 %v186, 0.5
      %v193 = vmul.f32 %v191, %v185
      %v194 = vmul.f32 %v192, %v186
      %v195 = vsub.f32 %v187, 0.5
      %v196 = vsub.f32 %v188, 0.5
      %v197 = vsel %vm189, %v193, %v195
      %v198 = vsel %vm190, %v194, %v196
      %v199 = vld [vmem:[#allocation10] sm:$0xf]
      %v200 = vld [vmem:[#allocation10 + $0x4] sm:$0xf]
      %v201 = vunpack.c.l.bf16 %v199
      %v202 = vunpack.c.l.bf16 %v200
      %v203 = vmul.f32 %v197, %v201
      %v204 = vmul.f32 %v198, %v202
      %v205 = vld [vmem:[#allocation2] sm:$0xff]
      %v206 = vadd.f32 %v203, %v204
      %v207 = vadd.f32 %v205, %v206
      %208 = vst [vmem:[#allocation2] sm:$0xff] %v207
      %v209 = vld [vmem:[#allocation11] sm:$0xff]
      %v210 = vld [vmem:[#allocation11 + $0x8] sm:$0xff]
      %v211 = vld [vmem:[#allocation11 + $0x10] sm:$0xff]
      %v212 = vld [vmem:[#allocation11 + $0x18] sm:$0xff]
      %v213 = vld [vmem:[#allocation13] sm:$0xf]
      %v214 = vld [vmem:[#allocation13 + $0x4] sm:$0xf]
      %v215 = vld [vmem:[#allocation13 + $0x8] sm:$0xf]
      %v216 = vld [vmem:[#allocation13 + $0xc] sm:$0xf]
      %v217 = vunpack.c.l.bf16 %v213
      %v218 = vunpack.c.l.bf16 %v214
      %v219 = vunpack.c.l.bf16 %v215
      %v220 = vunpack.c.l.bf16 %v216
      %v221 = vand.u32 2147483647, %v209
      %v222 = vand.u32 2147483647, %v210
      %v223 = vand.u32 2147483647, %v211
      %v224 = vand.u32 2147483647, %v212
      %v225 = vsub.f32 0.0, %v221
      %v226 = vsub.f32 0.0, %v222
      %v227 = vsub.f32 0.0, %v223
      %v228 = vsub.f32 0.0, %v224
      %v229 = vmul.f32 %v225, 1.442695
      %v230 = vpow.pop %v229
      %v231 = vmul.f32 %v226, 1.442695
      %v232 = vpow.pop %v231
      %v233 = vmul.f32 %v227, 1.442695
      %v234 = vpow.pop %v233
      %v235 = vmul.f32 %v228, 1.442695
      %v236 = vpow.pop %v235
      %v237 = vmax.f32 %v209, 0.0
      %v238 = vmax.f32 %v210, 0.0
      %v239 = vmax.f32 %v211, 0.0
      %v240 = vmax.f32 %v212, 0.0
      %v241 = vmul.f32 %v209, %v217
      %v242 = vmul.f32 %v210, %v218
      %v243 = vmul.f32 %v211, %v219
      %v244 = vmul.f32 %v212, %v220
      %v245 = vsub.f32 %v237, %v241
      %v246 = vsub.f32 %v238, %v242
      %v247 = vsub.f32 %v239, %v243
      %v248 = vsub.f32 %v240, %v244
      %v249 = vadd.f32 %v230, 1.0
      %v250 = vlog2.pop %v249
      %v251 = vmul.f32 %v250, 0.6931472
      %v252 = vmul.f32 -0.5, %v230
      %v253 = vadd.f32 %v252, 1.0
      %v254 = vmul.f32 %v253, %v230
      %v255 = vand.u32 2147483647, %v230
      %vm256 = vcmp.lt.f32.partialorder %v255, 0.0004427343
      %v257 = vsel %vm256, %v254, %v251
      %v258 = vadd.f32 %v232, 1.0
      %v259 = vlog2.pop %v258
      %v260 = vmul.f32 %v259, 0.6931472
      %v261 = vmul.f32 -0.5, %v232
      %v262 = vadd.f32 %v261, 1.0
      %v263 = vmul.f32 %v262, %v232
      %v264 = vand.u32 2147483647, %v232
      %vm265 = vcmp.lt.f32.partialorder %v264, 0.0004427343
      %v266 = vsel %vm265, %v263, %v260
      %v267 = vadd.f32 %v234, 1.0
      %v268 = vlog2.pop %v267
      %v269 = vmul.f32 %v268, 0.6931472
      %v270 = vmul.f32 -0.5, %v234
      %v271 = vadd.f32 %v270, 1.0
      %v272 = vmul.f32 %v271, %v234
      %v273 = vand.u32 2147483647, %v234
      %vm274 = vcmp.lt.f32.partialorder %v273, 0.0004427343
      %v275 = vsel %vm274, %v272, %v269
      %v276 = vadd.f32 %v236, 1.0
      %v277 = vlog2.pop %v276
      %v278 = vmul.f32 %v277, 0.6931472
      %v279 = vmul.f32 -0.5, %v236
      %v280 = vadd.f32 %v279, 1.0
      %v281 = vmul.f32 %v280, %v236
      %v282 = vand.u32 2147483647, %v236
      %vm283 = vcmp.lt.f32.partialorder %v282, 0.0004427343
      %v284 = vsel %vm283, %v281, %v278
      %v285 = vadd.f32 %v245, %v257
      %v286 = vadd.f32 %v246, %v266
      %v287 = vadd.f32 %v247, %v275
      %v288 = vadd.f32 %v248, %v284
      %vm289 = vcmp.ge.f32.partialorder %v209, 0.0
      %vm290 = vcmp.ge.f32.partialorder %v210, 0.0
      %vm291 = vcmp.ge.f32.partialorder %v211, 0.0
      %vm292 = vcmp.ge.f32.partialorder %v212, 0.0
      %v293 = vsel %vm289, 1.0, %v230
      %v294 = vsel %vm290, 1.0, %v232
      %v295 = vsel %vm291, 1.0, %v234
      %v296 = vsel %vm292, 1.0, %v236
      %v297 = vadd.f32 %v230, 1.0
      %v298 = vadd.f32 %v232, 1.0
      %v299 = vadd.f32 %v234, 1.0
      %v300 = vadd.f32 %v236, 1.0
      %v301 = vrcp.pop %v297
      %v302 = vmul.f32 %v293, %v301
      %v303 = vrcp.pop %v298
      %v304 = vmul.f32 %v294, %v303
      %v305 = vrcp.pop %v299
      %v306 = vmul.f32 %v295, %v305
      %v307 = vrcp.pop %v300
      %v308 = vmul.f32 %v296, %v307
      %v309 = vadd.f32 %v302, %v217
      %v310 = vadd.f32 %v304, %v218
      %v311 = vadd.f32 %v306, %v219
      %v312 = vadd.f32 %v308, %v220
      %v313 = vmul.f32 %v302, 2.0
      %v314 = vmul.f32 %v304, 2.0
      %v315 = vmul.f32 %v306, 2.0
      %v316 = vmul.f32 %v308, 2.0
      %v317 = vmul.f32 %v313, %v217
      %v318 = vmul.f32 %v314, %v218
      %v319 = vmul.f32 %v315, %v219
      %v320 = vmul.f32 %v316, %v220
      %v321 = vsub.f32 %v309, %v317
      %v322 = vsub.f32 %v310, %v318
      %v323 = vsub.f32 %v311, %v319
      %v324 = vsub.f32 %v312, %v320
      %v325 = vmul.f32 %v217, -0.5
      %v326 = vmul.f32 %v218, -0.5
      %v327 = vmul.f32 %v219, -0.5
      %v328 = vmul.f32 %v220, -0.5
      %v329 = vadd.f32 %v325, 0.75
      %v330 = vadd.f32 %v326, 0.75
      %v331 = vadd.f32 %v327, 0.75
      %v332 = vadd.f32 %v328, 0.75
      %v333 = vmul.f32 %v321, %v321
      %v334 = vmul.f32 %v322, %v322
      %v335 = vmul.f32 %v323, %v323
      %v336 = vmul.f32 %v324, %v324
      %v337 = vmul.f32 %v329, %v333
      %v338 = vmul.f32 %v330, %v334
      %v339 = vmul.f32 %v331, %v335
      %v340 = vmul.f32 %v332, %v336
      %v341 = vmul.f32 %v337, %v285
      %v342 = vmul.f32 %v338, %v286
      %v343 = vmul.f32 %v339, %v287
      %v344 = vmul.f32 %v340, %v288
      %v345 = vld [vmem:[#allocation14] sm:$0xf]
      %v346 = vld [vmem:[#allocation14 + $0x4] sm:$0xf]
      %v347 = vld [vmem:[#allocation14 + $0x8] sm:$0xf]
      %v348 = vld [vmem:[#allocation14 + $0xc] sm:$0xf]
      %v349 = vunpack.c.l.bf16 %v345
      %v350 = vunpack.c.l.bf16 %v346
      %v351 = vunpack.c.l.bf16 %v347
      %v352 = vunpack.c.l.bf16 %v348
      %v353 = vmul.f32 %v341, %v349
      %v354 = vmul.f32 %v342, %v350
      %v355 = vmul.f32 %v343, %v351
      %v356 = vmul.f32 %v344, %v352
      %v357 = vld [vmem:[#allocation3] sm:$0xff]
      %v358 = vadd.f32 %v353, %v354
      %v359 = vadd.f32 %v358, %v355
      %v360 = vadd.f32 %v359, %v356
      %v361 = vadd.f32 %v357, %v360
      %362 = vst [vmem:[#allocation3] sm:$0xff] %v361
    $region61: #{tpu_custom_call.1} parent=1 // pred_fallthru
      _
    // Predicated region
    $region62: #{tpu_custom_call.1} parent=1 // pred_check
      %p363 = pneg %p171
    $region63: #{tpu_custom_call.1} parent=1 // pred_check_branch
      %365 = sbr.rel (%p363) target = $region65
    $region64: #{tpu_custom_call.1} parent=1 // pred_region
      %s366 = sld [smem:[#allocation4]]
      %s367 = smax.f32 %s366, 1.0
      %v368 = vstv %s367
      %v369 = vrcp.pop %v368
      %s370 = vtos %v369
      %v371 = vld [vmem:[#allocation2] sm:$0xff]
      %372 = vadd.xlane.f32.xlu0 %v371
      %v373 = vpop.xlane.xlu0 %372
      %v374 = vrot.slane %v373, 4
      %v375 = vadd.f32 %v373, %v374
      %v376 = vrot.slane %v375, 2
      %v377 = vadd.f32 %v375, %v376
      %v378 = vrot.slane %v377, 1
      %v379 = vadd.f32 %v377, %v378
      %s380 = vtos %v379
      %s381 = smul.f32 %s380, %s370
      %v382 = vld [vmem:[#allocation3] sm:$0xff]
      %383 = vadd.xlane.f32.xlu0 %v382
      %v384 = vpop.xlane.xlu0 %383
      %v385 = vrot.slane %v384, 4
      %v386 = vadd.f32 %v384, %v385
      %v387 = vrot.slane %v386, 2
      %v388 = vadd.f32 %v386, %v387
      %v389 = vrot.slane %v388, 1
      %v390 = vadd.f32 %v388, %v389
      %s391 = vtos %v390
      %s392 = smul.f32 %s391, %s370
      %s393 = sadd.f32 %s381, %s392
      %v394 = vlaneseq
      %v395 = vshrl.u32 %v394, 7
      %v396 = vlaneseq
      %v397 = vand.u32 %v396, 127
      %vm398 = vcmp.eq.s32.totalorder %v395, 0
      %vm399 = vcmp.eq.s32.totalorder %v397, 0
      %vm400 = vmand %vm398, %vm399
      %vm401 = vcmp.eq.s32.totalorder %v397, 1
      %vm402 = vmand %vm398, %vm401
      %vm403 = vcmp.eq.s32.totalorder %v397, 2
      %vm404 = vmand %vm398, %vm403
      %v405 = vstv %s392
      %v406 = vsel %vm404, %v405, 0.0
      %v407 = vstv %s381
      %v408 = vsel %vm402, %v407, %v406
      %v409 = vstv %s393
      %v410 = vsel %vm400, %v409, %v408
      %411 = vst [vmem:[#allocation16] sm:$0xff] %v410
    $region65: #{tpu_custom_call.1} parent=1 // pred_fallthru
      _
    // Predicated region
    $region66: #{tpu_custom_call.1} parent=1 // pred_check
      _
    $region67: #{tpu_custom_call.1} parent=1 // pred_check_branch
      %413 = sbr.rel (0) target = $region69
    $region68: #{tpu_custom_call.1} parent=1 // pred_region
      %s415 = ssub.s32 128, 128
      %416 = vsyncadd [#allocation7], %s415
      %s418 = sshll.u32 [#allocation16], 4
      %s419 = int_to_ptr.vmem [resolvable:$true] %s418
      %421 = dma.vmem_to_hbm [thread:$0]  %s419, 128, %s7, [#allocation7]
    $region69: #{tpu_custom_call.1} parent=1 // pred_fallthru
      _
    // Predicated region
    $region70: #{tpu_custom_call.1} parent=1 // pred_check
      _
    $region71: #{tpu_custom_call.1} parent=1 // pred_check_branch
      %423 = sbr.rel (0) target = $region73
    $region72: #{tpu_custom_call.1} parent=1 // pred_region
      %424 = dma.done [#allocation7], 128
    $region73: #{tpu_custom_call.1} parent=1 // pred_fallthru
      _
    %425 = vsyncpa [#allocation6], 1
    %426 = vsyncpa [#allocation9], 1
    %427 = vsyncpa [#allocation12], 1
    %428 = vsyncpa [#allocation15], 1
    %429 = vsyncpa [#allocation7], 1

</llo_original>
